<compile_context>
chip_gen: v5e
topology: v5e:2x2
jax: 0.10.0
libtpu: 0.0.40
codegen_flags: <defaults>
</compile_context>

<pallas_src>
import functools

import jax
import jax.numpy as jnp
from jax.experimental import pallas as pl
from jax.experimental.pallas import tpu as pltpu

# Keep XLA-side matmuls (comb precompute + reference) at full f32 precision so
# the Pallas f32 matmul and the reference agree tightly.
jax.config.update("jax_default_matmul_precision", "highest")

N_EMBED = 32
VOCAB_SIZE = 65          # e.g. tiny-shakespeare charset size
V_PAD = 128              # vocab padded to the 128-lane width
ROW_BLOCK = 1024         # rows (flattened tokens) per grid step for large N


def _round_up(x, m):
    return -(-x // m) * m


# ------------------------------- kernels ----------------------------------- #
def _block_logits(tokens_ref, comb_ref):
    """One combined one-hot matmul: (rows, 2*V_PAD) @ (2*V_PAD, V_PAD)."""
    rows = tokens_ref.shape[0]
    k = comb_ref.shape[0]                 # 2 * V_PAD
    v_pad = comb_ref.shape[1]             # V_PAD
    idx = tokens_ref[:, 0:1]              # (rows, 1) token id   -> rows [0, V)
    pos = tokens_ref[:, 1:2] + v_pad      # (rows, 1) position   -> rows [V_PAD, V_PAD+T)
    lane = jax.lax.broadcasted_iota(jnp.int32, (rows, k), 1)
    oh = jnp.logical_or(lane == idx, lane == pos).astype(jnp.float32)
    return jnp.dot(oh, comb_ref[...], preferred_element_type=jnp.float32)


def _logits_kernel(tokens_ref, comb_ref, logits_ref):
    logits_ref[...] = _block_logits(tokens_ref, comb_ref)


def _logits_loss_kernel(tokens_ref, comb_ref, logits_ref, loss_ref,
                        *, n_true, v_true):
    logits = _block_logits(tokens_ref, comb_ref)
    logits_ref[...] = logits

    rows, v_pad = logits.shape
    lane = jax.lax.broadcasted_iota(jnp.int32, (rows, v_pad), 1)
    tgt = tokens_ref[:, 2:3]                                   # (rows, 1)
    tgt_oh = (lane == tgt).astype(jnp.float32)

    # Mask padded vocab lanes out of the logsumexp.
    masked = jnp.where(lane < v_true, logits, -1e30)
    m = jnp.max(masked, axis=-1, keepdims=True)
    lse = m + jnp.log(jnp.sum(jnp.exp(masked - m), axis=-1, keepdims=True))
    picked = jnp.sum(masked * tgt_oh, axis=-1, keepdims=True)

    # Mask padded rows (ragged last block) out of the sum.
    row_id = (pl.program_id(0) * rows
              + jax.lax.broadcasted_iota(jnp.int32, (rows, 1), 0))
    valid = (row_id < n_true).astype(jnp.float32)
    block_sum = jnp.sum((lse - picked) * valid, axis=0, keepdims=True)  # (1,1)

    @pl.when(pl.program_id(0) == 0)
    def _():
        loss_ref[...] = jnp.zeros_like(loss_ref)

    loss_ref[...] += block_sum


# ------------------------------- wrapper ------------------------------------ #
@functools.partial(
    jax.jit,
    static_argnames=("batch", "seq", "block_rows", "grid", "with_loss"))
def _forward_impl(idx_flat, tgt_flat, tok_tab, pos_tab, w, b,
                  *, batch, seq, block_rows, grid, with_loss):
    n = batch * seq
    n_pad = block_rows * grid
    v = w.shape[1]

    # Fold the whole model into one resident (2*V_PAD, V_PAD) projection table.
    #   rows [0, V)             : token_embedding @ W
    #   rows [V_PAD, V_PAD + T) : pos_embedding[:T] @ W + b
    comb = jnp.zeros((2 * V_PAD, V_PAD), jnp.float32)
    comb = comb.at[:v, :v].set(tok_tab @ w)
    comb = comb.at[V_PAD:V_PAD + seq, :v].set(pos_tab[:seq] @ w + b)

    pos_flat = jnp.tile(jnp.arange(seq, dtype=jnp.int32), batch)
    pad = n_pad - n
    tokens = jnp.stack([
        jnp.pad(idx_flat.astype(jnp.int32), (0, pad)),
        jnp.pad(pos_flat, (0, pad)),
        jnp.pad(tgt_flat.astype(jnp.int32), (0, pad)),
        jnp.zeros((n_pad,), jnp.int32),
    ], axis=1)                                                  # (n_pad, 4)

    tokens_spec = pl.BlockSpec((block_rows, 4), lambda i: (i, 0))
    comb_spec = pl.BlockSpec((2 * V_PAD, V_PAD), lambda i: (0, 0))   # resident
    logits_spec = pl.BlockSpec((block_rows, V_PAD), lambda i: (i, 0))

    matmul_flops = 2 * n_pad * (2 * V_PAD) * V_PAD
    bytes_accessed = tokens.size * 4 + comb.size * 4 + n_pad * V_PAD * 4

    if with_loss:
        kernel = functools.partial(_logits_loss_kernel, n_true=n, v_true=v)
        logits_pad, loss_sum = pl.pallas_call(
            kernel,
            grid=(grid,),
            in_specs=[tokens_spec, comb_spec],
            out_specs=(logits_spec, pl.BlockSpec((1, 1), lambda i: (0, 0))),
            out_shape=(jax.ShapeDtypeStruct((n_pad, V_PAD), jnp.float32),
                       jax.ShapeDtypeStruct((1, 1), jnp.float32)),
            compiler_params=pltpu.CompilerParams(
                dimension_semantics=("arbitrary",),   # loss block carried
                vmem_limit_bytes=32 * 1024 * 1024),
            cost_estimate=pl.CostEstimate(
                flops=matmul_flops,
                transcendentals=n_pad * (V_PAD + 1),
                bytes_accessed=bytes_accessed),
        )(tokens, comb)
        logits = logits_pad[:n, :v]          # matches PyTorch .view(B*T, C)
        loss = loss_sum[0, 0] / n            # divide by TRUE token count
        return logits, loss

    logits_pad = pl.pallas_call(
        _logits_kernel,
        grid=(grid,),
        in_specs=[tokens_spec, comb_spec],
        out_specs=logits_spec,
        out_shape=jax.ShapeDtypeStruct((n_pad, V_PAD), jnp.float32),
        compiler_params=pltpu.CompilerParams(
            dimension_semantics=("parallel",),        # 2-TC split on v7x
            vmem_limit_bytes=32 * 1024 * 1024),
        cost_estimate=pl.CostEstimate(
            flops=matmul_flops, transcendentals=0,
            bytes_accessed=bytes_accessed),
    )(tokens, comb)
    logits = logits_pad[:n, :v].reshape(batch, seq, v)
    return logits, None


class BigramLanguageModel:
    """JAX/Pallas re-implementation of the PyTorch BigramLanguageModel."""

    def __init__(self, key, vocab_size=VOCAB_SIZE, n_embed=N_EMBED):
        k1, k2, k3, k4 = jax.random.split(key, 4)
        # nn.Embedding default init: N(0, 1)
        self.token_embedding_table = jax.random.normal(
            k1, (vocab_size, n_embed), jnp.float32)
        self.pos_embedding_table = jax.random.normal(
            k2, (vocab_size, n_embed), jnp.float32)
        # nn.Linear default init: U(-1/sqrt(in), 1/sqrt(in)); store W as (E, V)
        bound = 1.0 / (n_embed ** 0.5)
        self.lm_head_w = jax.random.uniform(
            k3, (n_embed, vocab_size), jnp.float32, -bound, bound)
        self.lm_head_b = jax.random.uniform(
            k4, (1, vocab_size), jnp.float32, -bound, bound)
        self.vocab_size = vocab_size
        self.n_embed = n_embed

    def forward(self, idx, targets=None):
        B, T = idx.shape
        if T > self.vocab_size:
            # PyTorch's nn.Embedding(vocab_size, .) would raise for pos >= vocab_size
            raise ValueError(
                f"T={T} exceeds pos_embedding_table size {self.vocab_size}")
        n = B * T
        block_rows = ROW_BLOCK if n >= ROW_BLOCK else _round_up(n, 8)
        grid = _round_up(n, block_rows) // block_rows

        idx_flat = idx.reshape(n).astype(jnp.int32)
        if targets is None:
            tgt_flat = jnp.zeros((n,), jnp.int32)
            with_loss = False
        else:
            tgt_flat = targets.reshape(n).astype(jnp.int32)
            with_loss = True

        return _forward_impl(
            idx_flat, tgt_flat,
            self.token_embedding_table, self.pos_embedding_table,
            self.lm_head_w, self.lm_head_b,
            batch=B, seq=T, block_rows=block_rows, grid=grid,
            with_loss=with_loss)


# --------------------------- reference & test ------------------------------- #
def _reference_forward(model, idx, targets=None):
    B, T = idx.shape
    tok_emb = model.token_embedding_table[idx]                 # (B, T, E)
    pos_emb = model.pos_embedding_table[jnp.arange(T)]         # (T, E)
    x = tok_emb + pos_emb[None, :, :]
    logits = x @ model.lm_head_w + model.lm_head_b[0]          # (B, T, V)
    if targets is None:
        return logits, None
    lf = logits.reshape(B * T, -1)
    tf = targets.reshape(B * T)
    lse = jax.scipy.special.logsumexp(lf, axis=-1)
    picked = jnp.take_along_axis(lf, tf[:, None], axis=-1)[:, 0]
    return lf, jnp.mean(lse - picked)


if __name__ == "__main__":
    key = jax.random.PRNGKey(0)
    mkey, dkey, tkey, dkey2, tkey2 = jax.random.split(key, 5)

    model = BigramLanguageModel(mkey)

    # --- small shapes (B=2, T=8): single grid step ---
    B, T = 2, 8
    idx = jax.random.randint(dkey, (B, T), 0, VOCAB_SIZE, dtype=jnp.int32)
    targets = jax.random.randint(tkey, (B, T), 0, VOCAB_SIZE, dtype=jnp.int32)

    # no-targets path
    logits, loss = model.forward(idx)
    logits = jax.block_until_ready(logits)
    ref_logits, _ = _reference_forward(model, idx)
    assert loss is None
    assert logits.shape == (B, T, VOCAB_SIZE)
    assert jnp.allclose(logits, ref_logits, atol=1e-3, rtol=1e-3)

    # with-targets path (fused cross-entropy)
    logits_f, loss_v = model.forward(idx, targets)
    loss_v = jax.block_until_ready(loss_v)
    ref_lf, ref_loss = _reference_forward(model, idx, targets)
    assert logits_f.shape == (B * T, VOCAB_SIZE)
    assert jnp.allclose(logits_f, ref_lf, atol=1e-3, rtol=1e-3)
    assert jnp.allclose(loss_v, ref_loss, atol=1e-3, rtol=1e-3)

    # --- larger shape exercising the row grid (grid=2) + ragged row padding ---
    B2, T2 = 33, 64   # N = 2112 -> block_rows=1024, n_pad=3072, ragged last block
    idx2 = jax.random.randint(dkey2, (B2, T2), 0, VOCAB_SIZE, dtype=jnp.int32)
    tgt2 = jax.random.randint(tkey2, (B2, T2), 0, VOCAB_SIZE, dtype=jnp.int32)
    lf2, loss2 = model.forward(idx2, tgt2)
    loss2 = jax.block_until_ready(loss2)
    ref_lf2, ref_loss2 = _reference_forward(model, idx2, tgt2)
    assert jnp.allclose(lf2, ref_lf2, atol=1e-3, rtol=1e-3)
    assert jnp.allclose(loss2, ref_loss2, atol=1e-3, rtol=1e-3)

    print("KERNEL_OK")
</pallas_src>

<mosaic_0001>
module attributes {stable_mosaic.version = 11 : i64} {
  func.func @_logits_kernel(%arg0: i32, %arg1: memref<16x4xi32, #tpu.memory_space<vmem>>, %arg2: memref<256x128xf32, #tpu.memory_space<vmem>>, %arg3: memref<16x128xf32, #tpu.memory_space<vmem>>) attributes {dimension_semantics = [#tpu.dimension_semantics<parallel>], iteration_bounds = array<i64: 1>, scalar_prefetch = 0 : i64, scratch_operands = 0 : i64, tpu.core_type = #tpu.core_type<tc>, window_params = [{transform_indices = @transform_0, window_bounds = array<i64: 16, 4>}, {pipeline_mode = #tpu.pipeline_mode<synchronous>, transform_indices = @transform_1, window_bounds = array<i64: 256, 128>}, {transform_indices = @transform_2, window_bounds = array<i64: 16, 128>}]} {
    %c0 = arith.constant 0 : index
    %c0_0 = arith.constant 0 : index
    %0 = vector.load %arg1[%c0, %c0_0] : memref<16x4xi32, #tpu.memory_space<vmem>>, vector<16x1xi32>
    %c0_1 = arith.constant 0 : index
    %c1 = arith.constant 1 : index
    %1 = vector.load %arg1[%c0_1, %c1] : memref<16x4xi32, #tpu.memory_space<vmem>>, vector<16x1xi32>
    %c128_i32 = arith.constant 128 : i32
    %2 = vector.broadcast %c128_i32 : i32 to vector<16x1xi32>
    %3 = arith.addi %1, %2 : vector<16x1xi32>
    %4 = tpu.iota {dimensions = array<i32: 1>} : vector<16x256xi32>
    %5 = vector.broadcast %0 : vector<16x1xi32> to vector<16x256xi32>
    %6 = arith.cmpi eq, %4, %5 : vector<16x256xi32>
    %7 = vector.broadcast %3 : vector<16x1xi32> to vector<16x256xi32>
    %8 = arith.cmpi eq, %4, %7 : vector<16x256xi32>
    %9 = arith.ori %6, %8 : vector<16x256xi1>
    %10 = arith.extui %9 : vector<16x256xi1> to vector<16x256xi32>
    %11 = arith.sitofp %10 : vector<16x256xi32> to vector<16x256xf32>
    %c0_2 = arith.constant 0 : index
    %c0_3 = arith.constant 0 : index
    %12 = vector.load %arg2[%c0_2, %c0_3] : memref<256x128xf32, #tpu.memory_space<vmem>>, vector<256x128xf32>
    %cst = arith.constant dense<0.000000e+00> : vector<16x128xf32>
    %13 = tpu.matmul %11, %12, %cst {dimension_numbers = #tpu.dot_dimension_numbers<[1], [0], [0], [1], [0, 0, 1, 1], [], []>, precision = #tpu.contract_precision<fp32>} : vector<16x256xf32>, vector<256x128xf32>, vector<16x128xf32> -> vector<16x128xf32>
    %c0_4 = arith.constant 0 : index
    %c0_5 = arith.constant 0 : index
    %14 = vector.load %arg3[%c0_4, %c0_5] : memref<16x128xf32, #tpu.memory_space<vmem>>, vector<16x128xf32>
    tpu.vector_store %arg3[%c0_4, %c0_5], %13 {strides = array<i32>} : memref<16x128xf32, #tpu.memory_space<vmem>>, vector<16x128xf32>,
    return
  }
  func.func @transform_0(%arg0: i32) -> (i32, i32) {
    %c0_i32 = arith.constant 0 : i32
    %c0_i32_0 = arith.constant 0 : i32
    return %arg0, %c0_i32 : i32, i32
  }
  func.func @transform_1(%arg0: i32) -> (i32, i32) {
    %c0_i32 = arith.constant 0 : i32
    %c0_i32_0 = arith.constant 0 : i32
    %c0_i32_1 = arith.constant 0 : i32
    return %c0_i32, %c0_i32_0 : i32, i32
  }
  func.func @transform_2(%arg0: i32) -> (i32, i32) {
    %c0_i32 = arith.constant 0 : i32
    %c0_i32_0 = arith.constant 0 : i32
    return %arg0, %c0_i32 : i32, i32
  }
}

</mosaic_0001>

<llo_original>
// kernel: _forward_impl.1
$region0: #{_forward_impl.1}
  #allocation0 [shape = 'u32[]', space=smem, size = 0x4, offset = 0x4, fixed_abs, tag = 'smem constant byte address 0x4 - core index']
  #allocation1 [shape = 'u32[72,128]{1,0:T(1,128)}', space=vmem, size = 0x9000, scoped, tag = 'internal scratch']
  %s0 = inlined_call_operand.vmem [shape: s32[16,4], index: 0, kind: input, shape index: {}]
  %s1 = inlined_call_operand.vmem [shape: f32[256,128], index: 1, kind: input, shape index: {}]
  %s2 = inlined_call_operand.vmem [shape: f32[16,128], index: 2, kind: output, shape index: {}]
  %s3 = sld [smem:[#allocation0]]
  $region18: #{_forward_impl.1} parent=0
    _
  %s5 = ssub.s32 1, %s3
  %s6 = scalar_select 0, %s5, %s3
  // Predicated region
  $region2: #{_forward_impl.1} parent=0 // pred_check
    _
  $region3: #{_forward_impl.1} parent=0 // pred_check_branch
    %8 = sbr.rel (0) target = $region5
  $region4: #{_forward_impl.1} parent=0 // pred_region
    _
  $region5: #{_forward_impl.1} parent=0 // pred_fallthru
    _
  // Predicated region
  $region6: #{_forward_impl.1} parent=0 // pred_check
    _
  $region7: #{_forward_impl.1} parent=0 // pred_check_branch
    %10 = sbr.rel (0) target = $region9
  $region8: #{_forward_impl.1} parent=0 // pred_region
    _
  $region9: #{_forward_impl.1} parent=0 // pred_fallthru
    _
  %v11 = vld [vmem:[%s0] sm:$0xff]
  %v12 = vld [vmem:[%s0 + $0x8] sm:$0xff]
  %v13 = vadd.s32 %v11, 128
  %v14 = vadd.s32 %v12, 128
  %v15 = vlaneseq
  %v16 = vand.u32 %v15, 127
  %v17 = vadd.s32 %v16, 128
  %18 = vset.pattern.permute.xlu0 0
  %19 = vperm.xlu0 %18, %v11
  %v20 = vpop.permute.xlu0 %19
  %21 = vset.pattern.permute.xlu0 0
  %22 = vperm.xlu0 %21, %v12
  %v23 = vpop.permute.xlu0 %22
  %vm24 = vcmp.eq.s32.totalorder %v16, %v20
  %vm25 = vcmp.eq.s32.totalorder %v17, %v20
  %vm26 = vcmp.eq.s32.totalorder %v16, %v23
  %vm27 = vcmp.eq.s32.totalorder %v17, %v23
  %28 = vset.pattern.permute.xlu0 1
  %29 = vperm.xlu0 %28, %v13
  %v30 = vpop.permute.xlu0 %29
  %31 = vset.pattern.permute.xlu0 1
  %32 = vperm.xlu0 %31, %v14
  %v33 = vpop.permute.xlu0 %32
  %vm34 = vcmp.eq.s32.totalorder %v16, %v30
  %vm35 = vcmp.eq.s32.totalorder %v17, %v30
  %vm36 = vcmp.eq.s32.totalorder %v16, %v33
  %vm37 = vcmp.eq.s32.totalorder %v17, %v33
  %vm38 = vmor %vm24, %vm34
  %vm39 = vmor %vm25, %vm35
  %vm40 = vmor %vm26, %vm36
  %vm41 = vmor %vm27, %vm37
  %v42 = vsel %vm38, 1, 0
  %v43 = vsel %vm39, 1, 0
  %v44 = vsel %vm40, 1, 0
  %v45 = vsel %vm41, 1, 0
  %v46 = vcvt.s32.f32 %v42
  %v47 = vcvt.s32.f32 %v43
  %v48 = vcvt.s32.f32 %v44
  %v49 = vcvt.s32.f32 %v45
  %v50 = vld [vmem:[%s1] sm:$0xff]
  %v51 = vld [vmem:[%s1 + $0x8] sm:$0xff]
  %v52 = vld [vmem:[%s1 + $0x10] sm:$0xff]
  %v53 = vld [vmem:[%s1 + $0x18] sm:$0xff]
  %v54 = vld [vmem:[%s1 + $0x20] sm:$0xff]
  %v55 = vld [vmem:[%s1 + $0x28] sm:$0xff]
  %v56 = vld [vmem:[%s1 + $0x30] sm:$0xff]
  %v57 = vld [vmem:[%s1 + $0x38] sm:$0xff]
  %v58 = vld [vmem:[%s1 + $0x40] sm:$0xff]
  %v59 = vld [vmem:[%s1 + $0x48] sm:$0xff]
  %v60 = vld [vmem:[%s1 + $0x50] sm:$0xff]
  %v61 = vld [vmem:[%s1 + $0x58] sm:$0xff]
  %v62 = vld [vmem:[%s1 + $0x60] sm:$0xff]
  %v63 = vld [vmem:[%s1 + $0x68] sm:$0xff]
  %v64 = vld [vmem:[%s1 + $0x70] sm:$0xff]
  %v65 = vld [vmem:[%s1 + $0x78] sm:$0xff]
  %v66 = vld [vmem:[%s1 + $0x80] sm:$0xff]
  %v67 = vld [vmem:[%s1 + $0x88] sm:$0xff]
  %v68 = vld [vmem:[%s1 + $0x90] sm:$0xff]
  %v69 = vld [vmem:[%s1 + $0x98] sm:$0xff]
  %v70 = vld [vmem:[%s1 + $0xa0] sm:$0xff]
  %v71 = vld [vmem:[%s1 + $0xa8] sm:$0xff]
  %v72 = vld [vmem:[%s1 + $0xb0] sm:$0xff]
  %v73 = vld [vmem:[%s1 + $0xb8] sm:$0xff]
  %v74 = vld [vmem:[%s1 + $0xc0] sm:$0xff]
  %v75 = vld [vmem:[%s1 + $0xc8] sm:$0xff]
  %v76 = vld [vmem:[%s1 + $0xd0] sm:$0xff]
  %v77 = vld [vmem:[%s1 + $0xd8] sm:$0xff]
  %v78 = vld [vmem:[%s1 + $0xe0] sm:$0xff]
  %v79 = vld [vmem:[%s1 + $0xe8] sm:$0xff]
  %v80 = vld [vmem:[%s1 + $0xf0] sm:$0xff]
  %v81 = vld [vmem:[%s1 + $0xf8] sm:$0xff]
  %v82 = vand.u32 %v65, 4294901760
  %83 = vmatpush.msra.mxu0 %v82
  %v84 = vand.u32 %v64, 4294901760
  %85 = vmatpush.msra.mxu0 %v84
  %v86 = vand.u32 %v63, 4294901760
  %87 = vmatpush.msra.mxu0 %v86
  %v88 = vand.u32 %v62, 4294901760
  %89 = vmatpush.msra.mxu0 %v88
  %v90 = vand.u32 %v61, 4294901760
  %91 = vmatpush.msra.mxu0 %v90
  %v92 = vand.u32 %v60, 4294901760
  %93 = vmatpush.msra.mxu0 %v92
  %v94 = vand.u32 %v59, 4294901760
  %95 = vmatpush.msra.mxu0 %v94
  %v96 = vand.u32 %v58, 4294901760
  %97 = vmatpush.msra.mxu0 %v96
  %v98 = vand.u32 %v57, 4294901760
  %99 = vmatpush.msra.mxu0 %v98
  %v100 = vand.u32 %v56, 4294901760
  %101 = vmatpush.msra.mxu0 %v100
  %v102 = vand.u32 %v55, 4294901760
  %103 = vmatpush.msra.mxu0 %v102
  %v104 = vand.u32 %v54, 4294901760
  %105 = vmatpush.msra.mxu0 %v104
  %v106 = vand.u32 %v53, 4294901760
  %107 = vmatpush.msra.mxu0 %v106
  %v108 = vand.u32 %v52, 4294901760
  %109 = vmatpush.msra.mxu0 %v108
  %v110 = vand.u32 %v51, 4294901760
  %111 = vmatpush.msra.mxu0 %v110
  %v112 = vand.u32 %v50, 4294901760
  %113 = vmatpush.msra.mxu0 %v112
  %v114 = vand.u32 %v46, 4294901760
  %v115 = vsub.f32 %v46, %v114
  %v116 = vand.u32 %v115, 4294901760
  %v117 = vsub.f32 %v115, %v116
  %v118 = vand.u32 %v117, 4294901760
  %119 = vmatmul.f32.gmra.mxu0 %v118
  %v120 = vpop.f32.mrf.mxu0
  %v121 = vadd.f32 0.0, %v120
  %v122 = vand.u32 %v48, 4294901760
  %v123 = vsub.f32 %v48, %v122
  %v124 = vand.u32 %v123, 4294901760
  %v125 = vsub.f32 %v123, %v124
  %v126 = vand.u32 %v125, 4294901760
  %127 = vmatmul.f32.gmra.mxu0 %v126
  %v128 = vpop.f32.mrf.mxu0
  %v129 = vadd.f32 0.0, %v128
  %130 = vdwg.mxu0
  %v131 = vand.u32 %v65, 4294901760
  %v132 = vsub.f32 %v65, %v131
  %v133 = vand.u32 %v132, 4294901760
  %v134 = vsub.f32 %v132, %v133
  %v135 = vand.u32 %v134, 4294901760
  %136 = vmatpush.msra.mxu0 %v135
  %v137 = vand.u32 %v64, 4294901760
  %v138 = vsub.f32 %v64, %v137
  %v139 = vand.u32 %v138, 4294901760
  %v140 = vsub.f32 %v138, %v139
  %v141 = vand.u32 %v140, 4294901760
  %142 = vmatpush.msra.mxu0 %v141
  %v143 = vand.u32 %v63, 4294901760
  %v144 = vsub.f32 %v63, %v143
  %v145 = vand.u32 %v144, 4294901760
  %v146 = vsub.f32 %v144, %v145
  %v147 = vand.u32 %v146, 4294901760
  %148 = vmatpush.msra.mxu0 %v147
  %v149 = vand.u32 %v62, 4294901760
  %v150 = vsub.f32 %v62, %v149
  %v151 = vand.u32 %v150, 4294901760
  %v152 = vsub.f32 %v150, %v151
  %v153 = vand.u32 %v152, 4294901760
  %154 = vmatpush.msra.mxu0 %v153
  %v155 = vand.u32 %v61, 4294901760
  %v156 = vsub.f32 %v61, %v155
  %v157 = vand.u32 %v156, 4294901760
  %v158 = vsub.f32 %v156, %v157
  %v159 = vand.u32 %v158, 4294901760
  %160 = vmatpush.msra.mxu0 %v159
  %v161 = vand.u32 %v60, 4294901760
  %v162 = vsub.f32 %v60, %v161
  %v163 = vand.u32 %v162, 4294901760
  %v164 = vsub.f32 %v162, %v163
  %v165 = vand.u32 %v164, 4294901760
  %166 = vmatpush.msra.mxu0 %v165
  %v167 = vand.u32 %v59, 4294901760
  %v168 = vsub.f32 %v59, %v167
  %v169 = vand.u32 %v168, 4294901760
  %v170 = vsub.f32 %v168, %v169
  %v171 = vand.u32 %v170, 4294901760
  %172 = vmatpush.msra.mxu0 %v171
  %v173 = vand.u32 %v58, 4294901760
  %v174 = vsub.f32 %v58, %v173
  %v175 = vand.u32 %v174, 4294901760
  %v176 = vsub.f32 %v174, %v175
  %v177 = vand.u32 %v176, 4294901760
  %178 = vmatpush.msra.mxu0 %v177
  %v179 = vand.u32 %v57, 4294901760
  %v180 = vsub.f32 %v57, %v179
  %v181 = vand.u32 %v180, 4294901760
  %v182 = vsub.f32 %v180, %v181
  %v183 = vand.u32 %v182, 4294901760
  %184 = vmatpush.msra.mxu0 %v183
  %v185 = vand.u32 %v56, 4294901760
  %v186 = vsub.f32 %v56, %v185
  %v187 = vand.u32 %v186, 4294901760
  %v188 = vsub.f32 %v186, %v187
  %v189 = vand.u32 %v188, 4294901760
  %190 = vmatpush.msra.mxu0 %v189
  %v191 = vand.u32 %v55, 4294901760
  %v192 = vsub.f32 %v55, %v191
  %v193 = vand.u32 %v192, 4294901760
  %v194 = vsub.f32 %v192, %v193
  %v195 = vand.u32 %v194, 4294901760
  %196 = vmatpush.msra.mxu0 %v195
  %v197 = vand.u32 %v54, 4294901760
  %v198 = vsub.f32 %v54, %v197
  %v199 = vand.u32 %v198, 4294901760
  %v200 = vsub.f32 %v198, %v199
  %v201 = vand.u32 %v200, 4294901760
  %202 = vmatpush.msra.mxu0 %v201
  %v203 = vand.u32 %v53, 4294901760
  %v204 = vsub.f32 %v53, %v203
  %v205 = vand.u32 %v204, 4294901760
  %v206 = vsub.f32 %v204, %v205
  %v207 = vand.u32 %v206, 4294901760
  %208 = vmatpush.msra.mxu0 %v207
  %v209 = vand.u32 %v52, 4294901760
  %v210 = vsub.f32 %v52, %v209
  %v211 = vand.u32 %v210, 4294901760
  %v212 = vsub.f32 %v210, %v211
  %v213 = vand.u32 %v212, 4294901760
  %214 = vmatpush.msra.mxu0 %v213
  %v215 = vand.u32 %v51, 4294901760
  %v216 = vsub.f32 %v51, %v215
  %v217 = vand.u32 %v216, 4294901760
  %v218 = vsub.f32 %v216, %v217
  %v219 = vand.u32 %v218, 4294901760
  %220 = vmatpush.msra.mxu0 %v219
  %v221 = vand.u32 %v50, 4294901760
  %v222 = vsub.f32 %v50, %v221
  %v223 = vand.u32 %v222, 4294901760
  %v224 = vsub.f32 %v222, %v223
  %v225 = vand.u32 %v224, 4294901760
  %226 = vmatpush.msra.mxu0 %v225
  %v227 = vand.u32 %v46, 4294901760
  %228 = vmatmul.f32.gmra.mxu0 %v227
  %v229 = vpop.f32.mrf.mxu0
  %v230 = vadd.f32 %v121, %v229
  %v231 = vand.u32 %v48, 4294901760
  %232 = vmatmul.f32.gmra.mxu0 %v231
  %v233 = vpop.f32.mrf.mxu0
  %v234 = vadd.f32 %v129, %v233
  %235 = vdwg.mxu0
  %v236 = vand.u32 %v65, 4294901760
  %v237 = vsub.f32 %v65, %v236
  %238 = vmatpush.msra.mxu0 %v237
  %v239 = vand.u32 %v64, 4294901760
  %v240 = vsub.f32 %v64, %v239
  %241 = vmatpush.msra.mxu0 %v240
  %v242 = vand.u32 %v63, 4294901760
  %v243 = vsub.f32 %v63, %v242
  %244 = vmatpush.msra.mxu0 %v243
  %v245 = vand.u32 %v62, 4294901760
  %v246 = vsub.f32 %v62, %v245
  %247 = vmatpush.msra.mxu0 %v246
  %v248 = vand.u32 %v61, 4294901760
  %v249 = vsub.f32 %v61, %v248
  %250 = vmatpush.msra.mxu0 %v249
  %v251 = vand.u32 %v60, 4294901760
  %v252 = vsub.f32 %v60, %v251
  %253 = vmatpush.msra.mxu0 %v252
  %v254 = vand.u32 %v59, 4294901760
  %v255 = vsub.f32 %v59, %v254
  %256 = vmatpush.msra.mxu0 %v255
  %v257 = vand.u32 %v58, 4294901760
  %v258 = vsub.f32 %v58, %v257
  %259 = vmatpush.msra.mxu0 %v258
  %v260 = vand.u32 %v57, 4294901760
  %v261 = vsub.f32 %v57, %v260
  %262 = vmatpush.msra.mxu0 %v261
  %v263 = vand.u32 %v56, 4294901760
  %v264 = vsub.f32 %v56, %v263
  %265 = vmatpush.msra.mxu0 %v264
  %v266 = vand.u32 %v55, 4294901760
  %v267 = vsub.f32 %v55, %v266
  %268 = vmatpush.msra.mxu0 %v267
  %v269 = vand.u32 %v54, 4294901760
  %v270 = vsub.f32 %v54, %v269
  %271 = vmatpush.msra.mxu0 %v270
  %v272 = vand.u32 %v53, 4294901760
  %v273 = vsub.f32 %v53, %v272
  %274 = vmatpush.msra.mxu0 %v273
  %v275 = vand.u32 %v52, 4294901760
  %v276 = vsub.f32 %v52, %v275
  %277 = vmatpush.msra.mxu0 %v276
  %v278 = vand.u32 %v51, 4294901760
  %v279 = vsub.f32 %v51, %v278
  %280 = vmatpush.msra.mxu0 %v279
  %v281 = vand.u32 %v50, 4294901760
  %v282 = vsub.f32 %v50, %v281
  %283 = vmatpush.msra.mxu0 %v282
  %v284 = vand.u32 %v46, 4294901760
  %v285 = vsub.f32 %v46, %v284
  %286 = vmatmul.f32.gmra.mxu0 %v285
  %v287 = vpop.f32.mrf.mxu0
  %v288 = vadd.f32 %v230, %v287
  %v289 = vand.u32 %v48, 4294901760
  %v290 = vsub.f32 %v48, %v289
  %291 = vmatmul.f32.gmra.mxu0 %v290
  %v292 = vpop.f32.mrf.mxu0
  %v293 = vadd.f32 %v234, %v292
  %294 = vdwg.mxu0
  %v295 = vand.u32 %v65, 4294901760
  %296 = vmatpush.msra.mxu0 %v295
  %v297 = vand.u32 %v64, 4294901760
  %298 = vmatpush.msra.mxu0 %v297
  %v299 = vand.u32 %v63, 4294901760
  %300 = vmatpush.msra.mxu0 %v299
  %v301 = vand.u32 %v62, 4294901760
  %302 = vmatpush.msra.mxu0 %v301
  %v303 = vand.u32 %v61, 4294901760
  %304 = vmatpush.msra.mxu0 %v303
  %v305 = vand.u32 %v60, 4294901760
  %306 = vmatpush.msra.mxu0 %v305
  %v307 = vand.u32 %v59, 4294901760
  %308 = vmatpush.msra.mxu0 %v307
  %v309 = vand.u32 %v58, 4294901760
  %310 = vmatpush.msra.mxu0 %v309
  %v311 = vand.u32 %v57, 4294901760
  %312 = vmatpush.msra.mxu0 %v311
  %v313 = vand.u32 %v56, 4294901760
  %314 = vmatpush.msra.mxu0 %v313
  %v315 = vand.u32 %v55, 4294901760
  %316 = vmatpush.msra.mxu0 %v315
  %v317 = vand.u32 %v54, 4294901760
  %318 = vmatpush.msra.mxu0 %v317
  %v319 = vand.u32 %v53, 4294901760
  %320 = vmatpush.msra.mxu0 %v319
  %v321 = vand.u32 %v52, 4294901760
  %322 = vmatpush.msra.mxu0 %v321
  %v323 = vand.u32 %v51, 4294901760
  %324 = vmatpush.msra.mxu0 %v323
  %v325 = vand.u32 %v50, 4294901760
  %326 = vmatpush.msra.mxu0 %v325
  %v327 = vand.u32 %v46, 4294901760
  %v328 = vsub.f32 %v46, %v327
  %v329 = vand.u32 %v328, 4294901760
  %330 = vmatmul.f32.gmra.mxu0 %v329
  %v331 = vpop.f32.mrf.mxu0
  %v332 = vadd.f32 %v288, %v331
  %v333 = vand.u32 %v48, 4294901760
  %v334 = vsub.f32 %v48, %v333
  %v335 = vand.u32 %v334, 4294901760
  %336 = vmatmul.f32.gmra.mxu0 %v335
  %v337 = vpop.f32.mrf.mxu0
  %v338 = vadd.f32 %v293, %v337
  %339 = vdwg.mxu0
  %v340 = vand.u32 %v65, 4294901760
  %v341 = vsub.f32 %v65, %v340
  %v342 = vand.u32 %v341, 4294901760
  %343 = vmatpush.msra.mxu0 %v342
  %v344 = vand.u32 %v64, 4294901760
  %v345 = vsub.f32 %v64, %v344
  %v346 = vand.u32 %v345, 4294901760
  %347 = vmatpush.msra.mxu0 %v346
  %v348 = vand.u32 %v63, 4294901760
  %v349 = vsub.f32 %v63, %v348
  %v350 = vand.u32 %v349, 4294901760
  %351 = vmatpush.msra.mxu0 %v350
  %v352 = vand.u32 %v62, 4294901760
  %v353 = vsub.f32 %v62, %v352
  %v354 = vand.u32 %v353, 4294901760
  %355 = vmatpush.msra.mxu0 %v354
  %v356 = vand.u32 %v61, 4294901760
  %v357 = vsub.f32 %v61, %v356
  %v358 = vand.u32 %v357, 4294901760
  %359 = vmatpush.msra.mxu0 %v358
  %v360 = vand.u32 %v60, 4294901760
  %v361 = vsub.f32 %v60, %v360
  %v362 = vand.u32 %v361, 4294901760
  %363 = vmatpush.msra.mxu0 %v362
  %v364 = vand.u32 %v59, 4294901760
  %v365 = vsub.f32 %v59, %v364
  %v366 = vand.u32 %v365, 4294901760
  %367 = vmatpush.msra.mxu0 %v366
  %v368 = vand.u32 %v58, 4294901760
  %v369 = vsub.f32 %v58, %v368
  %v370 = vand.u32 %v369, 4294901760
  %371 = vmatpush.msra.mxu0 %v370
  %v372 = vand.u32 %v57, 4294901760
  %v373 = vsub.f32 %v57, %v372
  %v374 = vand.u32 %v373, 4294901760
  %375 = vmatpush.msra.mxu0 %v374
  %v376 = vand.u32 %v56, 4294901760
  %v377 = vsub.f32 %v56, %v376
  %v378 = vand.u32 %v377, 4294901760
  %379 = vmatpush.msra.mxu0 %v378
  %v380 = vand.u32 %v55, 4294901760
  %v381 = vsub.f32 %v55, %v380
  %v382 = vand.u32 %v381, 4294901760
  %383 = vmatpush.msra.mxu0 %v382
  %v384 = vand.u32 %v54, 4294901760
  %v385 = vsub.f32 %v54, %v384
  %v386 = vand.u32 %v385, 4294901760
  %387 = vmatpush.msra.mxu0 %v386
  %v388 = vand.u32 %v53, 4294901760
  %v389 = vsub.f32 %v53, %v388
  %v390 = vand.u32 %v389, 4294901760
  %391 = vmatpush.msra.mxu0 %v390
  %v392 = vand.u32 %v52, 4294901760
  %v393 = vsub.f32 %v52, %v392
  %v394 = vand.u32 %v393, 4294901760
  %395 = vmatpush.msra.mxu0 %v394
  %v396 = vand.u32 %v51, 4294901760
  %v397 = vsub.f32 %v51, %v396
  %v398 = vand.u32 %v397, 4294901760
  %399 = vmatpush.msra.mxu0 %v398
  %v400 = vand.u32 %v50, 4294901760
  %v401 = vsub.f32 %v50, %v400
  %v402 = vand.u32 %v401, 4294901760
  %403 = vmatpush.msra.mxu0 %v402
  %v404 = vand.u32 %v46, 4294901760
  %405 = vmatmul.f32.gmra.mxu0 %v404
  %v406 = vpop.f32.mrf.mxu0
  %v407 = vadd.f32 %v332, %v406
  %v408 = vand.u32 %v48, 4294901760
  %409 = vmatmul.f32.gmra.mxu0 %v408
  %v410 = vpop.f32.mrf.mxu0
  %v411 = vadd.f32 %v338, %v410
  %412 = vdwg.mxu0
  %v413 = vand.u32 %v65, 4294901760
  %414 = vmatpush.msra.mxu0 %v413
  %v415 = vand.u32 %v64, 4294901760
  %416 = vmatpush.msra.mxu0 %v415
  %v417 = vand.u32 %v63, 4294901760
  %418 = vmatpush.msra.mxu0 %v417
  %v419 = vand.u32 %v62, 4294901760
  %420 = vmatpush.msra.mxu0 %v419
  %v421 = vand.u32 %v61, 4294901760
  %422 = vmatpush.msra.mxu0 %v421
  %v423 = vand.u32 %v60, 4294901760
  %424 = vmatpush.msra.mxu0 %v423
  %v425 = vand.u32 %v59, 4294901760
  %426 = vmatpush.msra.mxu0 %v425
  %v427 = vand.u32 %v58, 4294901760
  %428 = vmatpush.msra.mxu0 %v427
  %v429 = vand.u32 %v57, 4294901760
  %430 = vmatpush.msra.mxu0 %v429
  %v431 = vand.u32 %v56, 4294901760
  %432 = vmatpush.msra.mxu0 %v431
  %v433 = vand.u32 %v55, 4294901760
  %434 = vmatpush.msra.mxu0 %v433
  %v435 = vand.u32 %v54, 4294901760
  %436 = vmatpush.msra.mxu0 %v435
  %v437 = vand.u32 %v53, 4294901760
  %438 = vmatpush.msra.mxu0 %v437
  %v439 = vand.u32 %v52, 4294901760
  %440 = vmatpush.msra.mxu0 %v439
  %v441 = vand.u32 %v51, 4294901760
  %442 = vmatpush.msra.mxu0 %v441
  %v443 = vand.u32 %v50, 4294901760
  %444 = vmatpush.msra.mxu0 %v443
  %v445 = vand.u32 %v46, 4294901760
  %446 = vmatmul.f32.gmra.mxu0 %v445
  %v447 = vpop.f32.mrf.mxu0
  %v448 = vadd.f32 %v407, %v447
  %v449 = vand.u32 %v48, 4294901760
  %450 = vmatmul.f32.gmra.mxu0 %v449
  %v451 = vpop.f32.mrf.mxu0
  %v452 = vadd.f32 %v411, %v451
  %453 = vdwg.mxu0
  %v454 = vand.u32 %v81, 4294901760
  %455 = vmatpush.msra.mxu0 %v454
  %v456 = vand.u32 %v80, 4294901760
  %457 = vmatpush.msra.mxu0 %v456
  %v458 = vand.u32 %v79, 4294901760
  %459 = vmatpush.msra.mxu0 %v458
  %v460 = vand.u32 %v78, 4294901760
  %461 = vmatpush.msra.mxu0 %v460
  %v462 = vand.u32 %v77, 4294901760
  %463 = vmatpush.msra.mxu0 %v462
  %v464 = vand.u32 %v76, 4294901760
  %465 = vmatpush.msra.mxu0 %v464
  %v466 = vand.u32 %v75, 4294901760
  %467 = vmatpush.msra.mxu0 %v466
  %v468 = vand.u32 %v74, 4294901760
  %469 = vmatpush.msra.mxu0 %v468
  %v470 = vand.u32 %v73, 4294901760
  %471 = vmatpush.msra.mxu0 %v470
  %v472 = vand.u32 %v72, 4294901760
  %473 = vmatpush.msra.mxu0 %v472
  %v474 = vand.u32 %v71, 4294901760
  %475 = vmatpush.msra.mxu0 %v474
  %v476 = vand.u32 %v70, 4294901760
  %477 = vmatpush.msra.mxu0 %v476
  %v478 = vand.u32 %v69, 4294901760
  %479 = vmatpush.msra.mxu0 %v478
  %v480 = vand.u32 %v68, 4294901760
  %481 = vmatpush.msra.mxu0 %v480
  %v482 = vand.u32 %v67, 4294901760
  %483 = vmatpush.msra.mxu0 %v482
  %v484 = vand.u32 %v66, 4294901760
  %485 = vmatpush.msra.mxu0 %v484
  %v486 = vand.u32 %v47, 4294901760
  %v487 = vsub.f32 %v47, %v486
  %v488 = vand.u32 %v487, 4294901760
  %v489 = vsub.f32 %v487, %v488
  %v490 = vand.u32 %v489, 4294901760
  %491 = vmatmul.f32.gmra.mxu0 %v490
  %v492 = vpop.f32.mrf.mxu0
  %v493 = vadd.f32 %v448, %v492
  %v494 = vand.u32 %v49, 4294901760
  %v495 = vsub.f32 %v49, %v494
  %v496 = vand.u32 %v495, 4294901760
  %v497 = vsub.f32 %v495, %v496
  %v498 = vand.u32 %v497, 4294901760
  %499 = vmatmul.f32.gmra.mxu0 %v498
  %v500 = vpop.f32.mrf.mxu0
  %v501 = vadd.f32 %v452, %v500
  %502 = vdwg.mxu0
  %v503 = vand.u32 %v81, 4294901760
  %v504 = vsub.f32 %v81, %v503
  %v505 = vand.u32 %v504, 4294901760
  %v506 = vsub.f32 %v504, %v505
  %v507 = vand.u32 %v506, 4294901760
  %508 = vmatpush.msra.mxu0 %v507
  %v509 = vand.u32 %v80, 4294901760
  %v510 = vsub.f32 %v80, %v509
  %v511 = vand.u32 %v510, 4294901760
  %v512 = vsub.f32 %v510, %v511
  %v513 = vand.u32 %v512, 4294901760
  %514 = vmatpush.msra.mxu0 %v513
  %v515 = vand.u32 %v79, 4294901760
  %v516 = vsub.f32 %v79, %v515
  %v517 = vand.u32 %v516, 4294901760
  %v518 = vsub.f32 %v516, %v517
  %v519 = vand.u32 %v518, 4294901760
  %520 = vmatpush.msra.mxu0 %v519
  %v521 = vand.u32 %v78, 4294901760
  %v522 = vsub.f32 %v78, %v521
  %v523 = vand.u32 %v522, 4294901760
  %v524 = vsub.f32 %v522, %v523
  %v525 = vand.u32 %v524, 4294901760
  %526 = vmatpush.msra.mxu0 %v525
  %v527 = vand.u32 %v77, 4294901760
  %v528 = vsub.f32 %v77, %v527
  %v529 = vand.u32 %v528, 4294901760
  %v530 = vsub.f32 %v528, %v529
  %v531 = vand.u32 %v530, 4294901760
  %532 = vmatpush.msra.mxu0 %v531
  %v533 = vand.u32 %v76, 4294901760
  %v534 = vsub.f32 %v76, %v533
  %v535 = vand.u32 %v534, 4294901760
  %v536 = vsub.f32 %v534, %v535
  %v537 = vand.u32 %v536, 4294901760
  %538 = vmatpush.msra.mxu0 %v537
  %v539 = vand.u32 %v75, 4294901760
  %v540 = vsub.f32 %v75, %v539
  %v541 = vand.u32 %v540, 4294901760
  %v542 = vsub.f32 %v540, %v541
  %v543 = vand.u32 %v542, 4294901760
  %544 = vmatpush.msra.mxu0 %v543
  %v545 = vand.u32 %v74, 4294901760
  %v546 = vsub.f32 %v74, %v545
  %v547 = vand.u32 %v546, 4294901760
  %v548 = vsub.f32 %v546, %v547
  %v549 = vand.u32 %v548, 4294901760
  %550 = vmatpush.msra.mxu0 %v549
  %v551 = vand.u32 %v73, 4294901760
  %v552 = vsub.f32 %v73, %v551
  %v553 = vand.u32 %v552, 4294901760
  %v554 = vsub.f32 %v552, %v553
  %v555 = vand.u32 %v554, 4294901760
  %556 = vmatpush.msra.mxu0 %v555
  %v557 = vand.u32 %v72, 4294901760
  %v558 = vsub.f32 %v72, %v557
  %v559 = vand.u32 %v558, 4294901760
  %v560 = vsub.f32 %v558, %v559
  %v561 = vand.u32 %v560, 4294901760
  %562 = vmatpush.msra.mxu0 %v561
  %v563 = vand.u32 %v71, 4294901760
  %v564 = vsub.f32 %v71, %v563
  %v565 = vand.u32 %v564, 4294901760
  %v566 = vsub.f32 %v564, %v565
  %v567 = vand.u32 %v566, 4294901760
  %568 = vmatpush.msra.mxu0 %v567
  %v569 = vand.u32 %v70, 4294901760
  %v570 = vsub.f32 %v70, %v569
  %v571 = vand.u32 %v570, 4294901760
  %v572 = vsub.f32 %v570, %v571
  %v573 = vand.u32 %v572, 4294901760
  %574 = vmatpush.msra.mxu0 %v573
  %v575 = vand.u32 %v69, 4294901760
  %v576 = vsub.f32 %v69, %v575
  %v577 = vand.u32 %v576, 4294901760
  %v578 = vsub.f32 %v576, %v577
  %v579 = vand.u32 %v578, 4294901760
  %580 = vmatpush.msra.mxu0 %v579
  %v581 = vand.u32 %v68, 4294901760
  %v582 = vsub.f32 %v68, %v581
  %v583 = vand.u32 %v582, 4294901760
  %v584 = vsub.f32 %v582, %v583
  %v585 = vand.u32 %v584, 4294901760
  %586 = vmatpush.msra.mxu0 %v585
  %v587 = vand.u32 %v67, 4294901760
  %v588 = vsub.f32 %v67, %v587
  %v589 = vand.u32 %v588, 4294901760
  %v590 = vsub.f32 %v588, %v589
  %v591 = vand.u32 %v590, 4294901760
  %592 = vmatpush.msra.mxu0 %v591
  %v593 = vand.u32 %v66, 4294901760
  %v594 = vsub.f32 %v66, %v593
  %v595 = vand.u32 %v594, 4294901760
  %v596 = vsub.f32 %v594, %v595
  %v597 = vand.u32 %v596, 4294901760
  %598 = vmatpush.msra.mxu0 %v597
  %v599 = vand.u32 %v47, 4294901760
  %600 = vmatmul.f32.gmra.mxu0 %v599
  %v601 = vpop.f32.mrf.mxu0
  %v602 = vadd.f32 %v493, %v601
  %v603 = vand.u32 %v49, 4294901760
  %604 = vmatmul.f32.gmra.mxu0 %v603
  %v605 = vpop.f32.mrf.mxu0
  %v606 = vadd.f32 %v501, %v605
  %607 = vdwg.mxu0
  %v608 = vand.u32 %v81, 4294901760
  %v609 = vsub.f32 %v81, %v608
  %610 = vmatpush.msra.mxu0 %v609
  %v611 = vand.u32 %v80, 4294901760
  %v612 = vsub.f32 %v80, %v611
  %613 = vmatpush.msra.mxu0 %v612
  %v614 = vand.u32 %v79, 4294901760
  %v615 = vsub.f32 %v79, %v614
  %616 = vmatpush.msra.mxu0 %v615
  %v617 = vand.u32 %v78, 4294901760
  %v618 = vsub.f32 %v78, %v617
  %619 = vmatpush.msra.mxu0 %v618
  %v620 = vand.u32 %v77, 4294901760
  %v621 = vsub.f32 %v77, %v620
  %622 = vmatpush.msra.mxu0 %v621
  %v623 = vand.u32 %v76, 4294901760
  %v624 = vsub.f32 %v76, %v623
  %625 = vmatpush.msra.mxu0 %v624
  %v626 = vand.u32 %v75, 4294901760
  %v627 = vsub.f32 %v75, %v626
  %628 = vmatpush.msra.mxu0 %v627
  %v629 = vand.u32 %v74, 4294901760
  %v630 = vsub.f32 %v74, %v629
  %631 = vmatpush.msra.mxu0 %v630
  %v632 = vand.u32 %v73, 4294901760
  %v633 = vsub.f32 %v73, %v632
  %634 = vmatpush.msra.mxu0 %v633
  %v635 = vand.u32 %v72, 4294901760
  %v636 = vsub.f32 %v72, %v635
  %637 = vmatpush.msra.mxu0 %v636
  %v638 = vand.u32 %v71, 4294901760
  %v639 = vsub.f32 %v71, %v638
  %640 = vmatpush.msra.mxu0 %v639
  %v641 = vand.u32 %v70, 4294901760
  %v642 = vsub.f32 %v70, %v641
  %643 = vmatpush.msra.mxu0 %v642
  %v644 = vand.u32 %v69, 4294901760
  %v645 = vsub.f32 %v69, %v644
  %646 = vmatpush.msra.mxu0 %v645
  %v647 = vand.u32 %v68, 4294901760
  %v648 = vsub.f32 %v68, %v647
  %649 = vmatpush.msra.mxu0 %v648
  %v650 = vand.u32 %v67, 4294901760
  %v651 = vsub.f32 %v67, %v650
  %652 = vmatpush.msra.mxu0 %v651
  %v653 = vand.u32 %v66, 4294901760
  %v654 = vsub.f32 %v66, %v653
  %655 = vmatpush.msra.mxu0 %v654
  %v656 = vand.u32 %v47, 4294901760
  %v657 = vsub.f32 %v47, %v656
  %658 = vmatmul.f32.gmra.mxu0 %v657
  %v659 = vpop.f32.mrf.mxu0
  %v660 = vadd.f32 %v602, %v659
  %v661 = vand.u32 %v49, 4294901760
  %v662 = vsub.f32 %v49, %v661
  %663 = vmatmul.f32.gmra.mxu0 %v662
  %v664 = vpop.f32.mrf.mxu0
  %v665 = vadd.f32 %v606, %v664
  %666 = vdwg.mxu0
  %v667 = vand.u32 %v81, 4294901760
  %668 = vmatpush.msra.mxu0 %v667
  %v669 = vand.u32 %v80, 4294901760
  %670 = vmatpush.msra.mxu0 %v669
  %v671 = vand.u32 %v79, 4294901760
  %672 = vmatpush.msra.mxu0 %v671
  %v673 = vand.u32 %v78, 4294901760
  %674 = vmatpush.msra.mxu0 %v673
  %v675 = vand.u32 %v77, 4294901760
  %676 = vmatpush.msra.mxu0 %v675
  %v677 = vand.u32 %v76, 4294901760
  %678 = vmatpush.msra.mxu0 %v677
  %v679 = vand.u32 %v75, 4294901760
  %680 = vmatpush.msra.mxu0 %v679
  %v681 = vand.u32 %v74, 4294901760
  %682 = vmatpush.msra.mxu0 %v681
  %v683 = vand.u32 %v73, 4294901760
  %684 = vmatpush.msra.mxu0 %v683
  %v685 = vand.u32 %v72, 4294901760
  %686 = vmatpush.msra.mxu0 %v685
  %v687 = vand.u32 %v71, 4294901760
  %688 = vmatpush.msra.mxu0 %v687
  %v689 = vand.u32 %v70, 4294901760
  %690 = vmatpush.msra.mxu0 %v689
  %v691 = vand.u32 %v69, 4294901760
  %692 = vmatpush.msra.mxu0 %v691
  %v693 = vand.u32 %v68, 4294901760
  %694 = vmatpush.msra.mxu0 %v693
  %v695 = vand.u32 %v67, 4294901760
  %696 = vmatpush.msra.mxu0 %v695
  %v697 = vand.u32 %v66, 4294901760
  %698 = vmatpush.msra.mxu0 %v697
  %v699 = vand.u32 %v47, 4294901760
  %v700 = vsub.f32 %v47, %v699
  %v701 = vand.u32 %v700, 4294901760
  %702 = vmatmul.f32.gmra.mxu0 %v701
  %v703 = vpop.f32.mrf.mxu0
  %v704 = vadd.f32 %v660, %v703
  %v705 = vand.u32 %v49, 4294901760
  %v706 = vsub.f32 %v49, %v705
  %v707 = vand.u32 %v706, 4294901760
  %708 = vmatmul.f32.gmra.mxu0 %v707
  %v709 = vpop.f32.mrf.mxu0
  %v710 = vadd.f32 %v665, %v709
  %711 = vdwg.mxu0
  %v712 = vand.u32 %v81, 4294901760
  %v713 = vsub.f32 %v81, %v712
  %v714 = vand.u32 %v713, 4294901760
  %715 = vmatpush.msra.mxu0 %v714
  %v716 = vand.u32 %v80, 4294901760
  %v717 = vsub.f32 %v80, %v716
  %v718 = vand.u32 %v717, 4294901760
  %719 = vmatpush.msra.mxu0 %v718
  %v720 = vand.u32 %v79, 4294901760
  %v721 = vsub.f32 %v79, %v720
  %v722 = vand.u32 %v721, 4294901760
  %723 = vmatpush.msra.mxu0 %v722
  %v724 = vand.u32 %v78, 4294901760
  %v725 = vsub.f32 %v78, %v724
  %v726 = vand.u32 %v725, 4294901760
  %727 = vmatpush.msra.mxu0 %v726
  %v728 = vand.u32 %v77, 4294901760
  %v729 = vsub.f32 %v77, %v728
  %v730 = vand.u32 %v729, 4294901760
  %731 = vmatpush.msra.mxu0 %v730
  %v732 = vand.u32 %v76, 4294901760
  %v733 = vsub.f32 %v76, %v732
  %v734 = vand.u32 %v733, 4294901760
  %735 = vmatpush.msra.mxu0 %v734
  %v736 = vand.u32 %v75, 4294901760
  %v737 = vsub.f32 %v75, %v736
  %v738 = vand.u32 %v737, 4294901760
  %739 = vmatpush.msra.mxu0 %v738
  %v740 = vand.u32 %v74, 4294901760
  %v741 = vsub.f32 %v74, %v740
  %v742 = vand.u32 %v741, 4294901760
  %743 = vmatpush.msra.mxu0 %v742
  %v744 = vand.u32 %v73, 4294901760
  %v745 = vsub.f32 %v73, %v744
  %v746 = vand.u32 %v745, 4294901760
  %747 = vmatpush.msra.mxu0 %v746
  %v748 = vand.u32 %v72, 4294901760
  %v749 = vsub.f32 %v72, %v748
  %v750 = vand.u32 %v749, 4294901760
  %751 = vmatpush.msra.mxu0 %v750
  %v752 = vand.u32 %v71, 4294901760
  %v753 = vsub.f32 %v71, %v752
  %v754 = vand.u32 %v753, 4294901760
  %755 = vmatpush.msra.mxu0 %v754
  %v756 = vand.u32 %v70, 4294901760
  %v757 = vsub.f32 %v70, %v756
  %v758 = vand.u32 %v757, 4294901760
  %759 = vmatpush.msra.mxu0 %v758
  %v760 = vand.u32 %v69, 4294901760
  %v761 = vsub.f32 %v69, %v760
  %v762 = vand.u32 %v761, 4294901760
  %763 = vmatpush.msra.mxu0 %v762
  %v764 = vand.u32 %v68, 4294901760
  %v765 = vsub.f32 %v68, %v764
  %v766 = vand.u32 %v765, 4294901760
  %767 = vmatpush.msra.mxu0 %v766
  %v768 = vand.u32 %v67, 4294901760
  %v769 = vsub.f32 %v67, %v768
  %v770 = vand.u32 %v769, 4294901760
  %771 = vmatpush.msra.mxu0 %v770
  %v772 = vand.u32 %v66, 4294901760
  %v773 = vsub.f32 %v66, %v772
  %v774 = vand.u32 %v773, 4294901760
  %775 = vmatpush.msra.mxu0 %v774
  %v776 = vand.u32 %v47, 4294901760
  %777 = vmatmul.f32.gmra.mxu0 %v776
  %v778 = vpop.f32.mrf.mxu0
  %v779 = vadd.f32 %v704, %v778
  %v780 = vand.u32 %v49, 4294901760
  %781 = vmatmul.f32.gmra.mxu0 %v780
  %v782 = vpop.f32.mrf.mxu0
  %v783 = vadd.f32 %v710, %v782
  %784 = vdwg.mxu0
  %v785 = vand.u32 %v81, 4294901760
  %786 = vmatpush.msra.mxu0 %v785
  %v787 = vand.u32 %v80, 4294901760
  %788 = vmatpush.msra.mxu0 %v787
  %v789 = vand.u32 %v79, 4294901760
  %790 = vmatpush.msra.mxu0 %v789
  %v791 = vand.u32 %v78, 4294901760
  %792 = vmatpush.msra.mxu0 %v791
  %v793 = vand.u32 %v77, 4294901760
  %794 = vmatpush.msra.mxu0 %v793
  %v795 = vand.u32 %v76, 4294901760
  %796 = vmatpush.msra.mxu0 %v795
  %v797 = vand.u32 %v75, 4294901760
  %798 = vmatpush.msra.mxu0 %v797
  %v799 = vand.u32 %v74, 4294901760
  %800 = vmatpush.msra.mxu0 %v799
  %v801 = vand.u32 %v73, 4294901760
  %802 = vmatpush.msra.mxu0 %v801
  %v803 = vand.u32 %v72, 4294901760
  %804 = vmatpush.msra.mxu0 %v803
  %v805 = vand.u32 %v71, 4294901760
  %806 = vmatpush.msra.mxu0 %v805
  %v807 = vand.u32 %v70, 4294901760
  %808 = vmatpush.msra.mxu0 %v807
  %v809 = vand.u32 %v69, 4294901760
  %810 = vmatpush.msra.mxu0 %v809
  %v811 = vand.u32 %v68, 4294901760
  %812 = vmatpush.msra.mxu0 %v811
  %v813 = vand.u32 %v67, 4294901760
  %814 = vmatpush.msra.mxu0 %v813
  %v815 = vand.u32 %v66, 4294901760
  %816 = vmatpush.msra.mxu0 %v815
  %v817 = vand.u32 %v47, 4294901760
  %818 = vmatmul.f32.gmra.mxu0 %v817
  %v819 = vpop.f32.mrf.mxu0
  %v820 = vadd.f32 %v779, %v819
  %v821 = vand.u32 %v49, 4294901760
  %822 = vmatmul.f32.gmra.mxu0 %v821
  %v823 = vpop.f32.mrf.mxu0
  %v824 = vadd.f32 %v783, %v823
  %825 = vdwg.mxu0
  %826 = vst [vmem:[%s2] sm:$0xff] %v820
  %827 = vst [vmem:[%s2 + $0x8] sm:$0xff] %v824
  // Predicated region
  $region10: #{_forward_impl.1} parent=0 // pred_check
    _
  $region11: #{_forward_impl.1} parent=0 // pred_check_branch
    %829 = sbr.rel (0) target = $region13
  $region12: #{_forward_impl.1} parent=0 // pred_region
    _
  $region13: #{_forward_impl.1} parent=0 // pred_fallthru
    _
  // Predicated region
  $region14: #{_forward_impl.1} parent=0 // pred_check
    _
  $region15: #{_forward_impl.1} parent=0 // pred_check_branch
    %831 = sbr.rel (0) target = $region17
  $region16: #{_forward_impl.1} parent=0 // pred_region
    _
  $region17: #{_forward_impl.1} parent=0 // pred_fallthru
    _

</llo_original>
